<compile_context>
chip_gen: v6e
topology: v6e:2x2x1
jax: 0.10.0
libtpu: 0.0.40
codegen_flags: <defaults>
</compile_context>

<pallas_src>
import functools
import math

import jax
import jax.numpy as jnp
from jax.experimental import pallas as pl
from jax.experimental.pallas import tpu as pltpu

_LANE = 128
_SUBLANE = 8


def _round_up(x: int, m: int) -> int:
    return ((x + m - 1) // m) * m


def _uniform_slab_kernel(seed_ref, z_ref, *, low, rng_range, block_rows):
    """Fill one (block_rows, 128) tile of the flat output slab with uniform
    samples in [low, low + rng_range)."""
    i = pl.program_id(0)

    shape = (block_rows, _LANE)
    rows = jax.lax.broadcasted_iota(jnp.int32, shape, 0) + i * block_rows
    cols = jax.lax.broadcasted_iota(jnp.int32, shape, 1)
    idx = (rows * _LANE + cols).astype(jnp.uint32)

    # Counter-based PRNG: hash(global_index, seed) -> 32 random bits.
    # Grid-invariant (depends only on the global element index), so the grid
    # axis is safe to mark "parallel" and any tile size gives identical z.
    seed = seed_ref[0].astype(jnp.uint32)
    x = idx + seed * jnp.uint32(0x9E3779B9)
    # "triple32" integer finalizer (xorshift / multiply rounds).
    x = x ^ (x >> jnp.uint32(17))
    x = x * jnp.uint32(0xED5AD4BB)
    x = x ^ (x >> jnp.uint32(11))
    x = x * jnp.uint32(0xAC4C1B51)
    x = x ^ (x >> jnp.uint32(15))
    x = x * jnp.uint32(0x31848BAB)
    x = x ^ (x >> jnp.uint32(14))

    # Top 23 bits -> uniform float in [0, 1)  (strictly < 1).
    mant = (x >> jnp.uint32(9)).astype(jnp.int32)            # in [0, 2^23)
    u01 = mant.astype(jnp.float32) * jnp.float32(1.0 / (1 << 23))

    # z = low + (high - low) * eps   (same affine map as the PyTorch forward)
    z_ref[...] = jnp.float32(low) + jnp.float32(rng_range) * u01


def uniform_dist_forward(num_samples: int, dim: int, seed: int,
                         low: float = -1.0, high: float = 1.0,
                         max_block_rows: int = 2048):
    """Pallas equivalent of UniformDist.forward(num_samples) -> (z, log_p)."""
    rng_range = float(high) - float(low)
    log_prob_val = -dim * math.log(rng_range)

    total = num_samples * dim
    rows = pl.cdiv(total, _LANE)
    block_rows = min(max_block_rows, _round_up(rows, _SUBLANE))
    rows_padded = _round_up(rows, block_rows)
    grid = (rows_padded // block_rows,)

    kernel = functools.partial(
        _uniform_slab_kernel,
        low=float(low),
        rng_range=rng_range,
        block_rows=block_rows,
    )

    seed_arr = jnp.asarray([seed], dtype=jnp.int32)
    bytes_out = rows_padded * _LANE * 4

    slab = pl.pallas_call(
        kernel,
        out_shape=jax.ShapeDtypeStruct((rows_padded, _LANE), jnp.float32),
        grid=grid,
        in_specs=[pl.BlockSpec(memory_space=pltpu.MemorySpace.SMEM)],
        out_specs=pl.BlockSpec((block_rows, _LANE), lambda i: (i, 0)),
        compiler_params=pltpu.CompilerParams(
            dimension_semantics=("parallel",),
        ),
        cost_estimate=pl.CostEstimate(
            flops=10 * rows_padded * _LANE,
            transcendentals=0,
            bytes_accessed=bytes_out,
        ),
    )(seed_arr)

    # Contiguous row-major slab -> (num_samples, dim); slice only if padded.
    flat = slab.reshape(-1)
    if flat.shape[0] != total:
        flat = flat[:total]
    z = flat.reshape(num_samples, dim)

    # log_p is a compile-time constant: produce it in the wrapper, not the kernel.
    log_p = jnp.full((num_samples,), log_prob_val, dtype=jnp.float32)
    return z, log_p


if __name__ == "__main__":
    # Small deterministic setup consistent with the module:
    # UniformDist(dim=32), forward(num_samples=8).
    dim = 32
    num_samples = 8
    low, high = -1.0, 1.0

    key = jax.random.PRNGKey(0)
    # Deterministic int32 seed for the in-kernel counter-based PRNG.
    seed = int(jax.random.randint(key, (), 0, 2**31 - 1, dtype=jnp.int32))

    z, log_p = uniform_dist_forward(num_samples, dim, seed, low=low, high=high)
    jax.block_until_ready((z, log_p))

    # Sanity checks on semantics (shapes, dtypes, value ranges, constant log_p).
    assert z.shape == (num_samples, dim) and z.dtype == jnp.float32
    assert log_p.shape == (num_samples,) and log_p.dtype == jnp.float32
    assert bool(jnp.all(z >= low)) and bool(jnp.all(z < high))
    expected_logp = -dim * math.log(high - low)
    assert bool(jnp.allclose(log_p, expected_logp))
    # Some spread across the support (not all-identical samples).
    assert bool((jnp.max(z) - jnp.min(z)) > 0.5 * (high - low))

    print("KERNEL_OK")
</pallas_src>

<mosaic_0001>
module attributes {stable_mosaic.version = 11 : i64} {
  func.func @_uniform_slab_kernel(%arg0: i32, %arg1: memref<1xi32, #tpu.memory_space<smem>>, %arg2: memref<8x128xf32, #tpu.memory_space<vmem>>) attributes {dimension_semantics = [#tpu.dimension_semantics<parallel>], iteration_bounds = array<i64: 1>, scalar_prefetch = 0 : i64, scratch_operands = 0 : i64, tpu.core_type = #tpu.core_type<tc>, window_params = [{transform_indices = @transform_0, window_bounds = array<i64: 1>}, {transform_indices = @transform_1, window_bounds = array<i64: 8, 128>}]} {
    %0 = tpu.iota {dimensions = array<i32: 0>} : vector<8x128xi32>
    %c8_i32 = arith.constant 8 : i32
    %1 = arith.muli %arg0, %c8_i32 : i32
    %2 = vector.broadcast %1 : i32 to vector<8x128xi32>
    %3 = arith.addi %0, %2 : vector<8x128xi32>
    %4 = tpu.iota {dimensions = array<i32: 1>} : vector<8x128xi32>
    %c128_i32 = arith.constant 128 : i32
    %5 = vector.broadcast %c128_i32 : i32 to vector<8x128xi32>
    %6 = arith.muli %3, %5 : vector<8x128xi32>
    %7 = arith.addi %6, %4 : vector<8x128xi32>
    %c0 = arith.constant 0 : index
    %8 = memref.load %arg1[%c0] : memref<1xi32, #tpu.memory_space<smem>>
    %c-1640531527_i32 = arith.constant -1640531527 : i32
    %9 = arith.muli %8, %c-1640531527_i32 : i32
    %10 = vector.broadcast %9 : i32 to vector<8x128xi32>
    %11 = arith.addi %7, %10 : vector<8x128xi32>
    %c17_i32 = arith.constant 17 : i32
    %12 = vector.broadcast %c17_i32 : i32 to vector<8x128xi32>
    %13 = arith.shrui %11, %12 : vector<8x128xi32>
    %14 = arith.xori %11, %13 : vector<8x128xi32>
    %c-312814405_i32 = arith.constant -312814405 : i32
    %15 = vector.broadcast %c-312814405_i32 : i32 to vector<8x128xi32>
    %16 = arith.muli %14, %15 : vector<8x128xi32>
    %c11_i32 = arith.constant 11 : i32
    %17 = vector.broadcast %c11_i32 : i32 to vector<8x128xi32>
    %18 = arith.shrui %16, %17 : vector<8x128xi32>
    %19 = arith.xori %16, %18 : vector<8x128xi32>
    %c-1404298415_i32 = arith.constant -1404298415 : i32
    %20 = vector.broadcast %c-1404298415_i32 : i32 to vector<8x128xi32>
    %21 = arith.muli %19, %20 : vector<8x128xi32>
    %c15_i32 = arith.constant 15 : i32
    %22 = vector.broadcast %c15_i32 : i32 to vector<8x128xi32>
    %23 = arith.shrui %21, %22 : vector<8x128xi32>
    %24 = arith.xori %21, %23 : vector<8x128xi32>
    %c830770091_i32 = arith.constant 830770091 : i32
    %25 = vector.broadcast %c830770091_i32 : i32 to vector<8x128xi32>
    %26 = arith.muli %24, %25 : vector<8x128xi32>
    %c14_i32 = arith.constant 14 : i32
    %27 = vector.broadcast %c14_i32 : i32 to vector<8x128xi32>
    %28 = arith.shrui %26, %27 : vector<8x128xi32>
    %29 = arith.xori %26, %28 : vector<8x128xi32>
    %c9_i32 = arith.constant 9 : i32
    %30 = vector.broadcast %c9_i32 : i32 to vector<8x128xi32>
    %31 = arith.shrui %29, %30 : vector<8x128xi32>
    %32 = arith.sitofp %31 : vector<8x128xi32> to vector<8x128xf32>
    %cst = arith.constant 1.1920929E-7 : f32
    %33 = vector.broadcast %cst : f32 to vector<8x128xf32>
    %34 = arith.mulf %32, %33 : vector<8x128xf32>
    %cst_0 = arith.constant 2.000000e+00 : f32
    %35 = vector.broadcast %cst_0 : f32 to vector<8x128xf32>
    %36 = arith.mulf %35, %34 : vector<8x128xf32>
    %cst_1 = arith.constant -1.000000e+00 : f32
    %37 = vector.broadcast %cst_1 : f32 to vector<8x128xf32>
    %38 = arith.addf %37, %36 : vector<8x128xf32>
    %c0_2 = arith.constant 0 : index
    %c0_3 = arith.constant 0 : index
    %39 = vector.load %arg2[%c0_2, %c0_3] : memref<8x128xf32, #tpu.memory_space<vmem>>, vector<8x128xf32>
    tpu.vector_store %arg2[%c0_2, %c0_3], %38 {strides = array<i32>} : memref<8x128xf32, #tpu.memory_space<vmem>>, vector<8x128xf32>,
    return
  }
  func.func @transform_0(%arg0: i32) -> i32 {
    %c0_i32 = arith.constant 0 : i32
    %c0_i32_0 = arith.constant 0 : i32
    return %c0_i32 : i32
  }
  func.func @transform_1(%arg0: i32) -> (i32, i32) {
    %c0_i32 = arith.constant 0 : i32
    %c0_i32_0 = arith.constant 0 : i32
    return %arg0, %c0_i32 : i32, i32
  }
}

</mosaic_0001>

<llo_original>
// kernel: tpu_custom_call.1
$region0: #{tpu_custom_call.1}
  #allocation0 [shape = 'u32[]', space=smem, size = 0x4, offset = 0x4, fixed_abs, tag = 'smem constant byte address 0x4 - core index']
  #allocation1 [shape = 'u32[144,128]{1,0:T(1,128)}', space=vmem, size = 0x12000, scoped, tag = 'internal scratch']
  #allocation2 [shape = 's32[1]{0:T(128)S(6)}', space=smem, size = 0x200, scoped, tag = 'scoped memory for tpu_custom_call.1']
  %s0 = inlined_call_operand.<no memory space> [shape: s32[1], index: 0, kind: input, shape index: {}]
  %s1 = inlined_call_operand.hbm [shape: f32[8,128], index: 1, kind: output, shape index: {}]
  %s2 = sld [smem:[#allocation0]]
  $region14: #{tpu_custom_call.1} parent=0
    _
  %s4 = ssub.s32 1, %s2
  %s5 = scalar_select 0, %s4, %s2
  %6 = sst [smem:[#allocation2]] %s0
  $region1: #{tpu_custom_call.1} parent=0
    #allocation3 [shape = 'u8[4096]{0}', space=vmem, size = 0x1000, scoped, tag = 'output window, operand 0, single buffered']
    #allocation4 [shape = 's32[1]{0}', space=sflag, size = 0x4, scoped, tag = 'scoped memory for tpu_custom_call.1']
    %7 = vsyncpa [#allocation4], 0
    // Predicated region
    $region2: #{tpu_custom_call.1} parent=1 // pred_check
      _
    $region3: #{tpu_custom_call.1} parent=1 // pred_check_branch
      %9 = sbr.rel (0) target = $region5
    $region4: #{tpu_custom_call.1} parent=1 // pred_region
      _
    $region5: #{tpu_custom_call.1} parent=1 // pred_fallthru
      _
    %v10 = vlaneseq
    %v11 = vshrl.u32 %v10, 7
    %s12 = smul.u32 0, 8
    %v13 = vstv %s12
    %v14 = vadd.s32 %v11, %v13
    %v15 = vlaneseq
    %v16 = vand.u32 %v15, 127
    %v17 = vmul.u32 %v14, 128
    %v18 = vadd.s32 %v17, %v16
    %s19 = sld [smem:[#allocation2]]
    %s20 = smul.u32 %s19, 2654435769
    %v21 = vstv %s20
    %v22 = vadd.s32 %v18, %v21
    %v23 = vshrl.u32 %v22, 17
    %v24 = vxor.u32 %v22, %v23
    %v25 = vmul.u32 %v24, 3982152891
    %v26 = vshrl.u32 %v25, 11
    %v27 = vxor.u32 %v25, %v26
    %v28 = vmul.u32 %v27, 2890668881
    %v29 = vshrl.u32 %v28, 15
    %v30 = vxor.u32 %v28, %v29
    %v31 = vmul.u32 %v30, 830770091
    %v32 = vshrl.u32 %v31, 14
    %v33 = vxor.u32 %v31, %v32
    %v34 = vshrl.u32 %v33, 9
    %v35 = vcvt.s32.f32 %v34
    %v36 = vmul.f32 %v35, 1.1920929e-07
    %v37 = vmul.f32 %v36, 2.0
    %v38 = vadd.f32 %v37, -1.0
    %39 = vst [vmem:[#allocation3] sm:$0xff] %v38
    // Predicated region
    $region6: #{tpu_custom_call.1} parent=1 // pred_check
      _
    $region7: #{tpu_custom_call.1} parent=1 // pred_check_branch
      %41 = sbr.rel (0) target = $region9
    $region8: #{tpu_custom_call.1} parent=1 // pred_region
      %s43 = ssub.s32 128, 128
      %44 = vsyncadd [#allocation4], %s43
      %s46 = sshll.u32 [#allocation3], 4
      %s47 = int_to_ptr.vmem [resolvable:$true] %s46
      %49 = dma.vmem_to_hbm [thread:$0]  %s47, 128, %s1, [#allocation4]
    $region9: #{tpu_custom_call.1} parent=1 // pred_fallthru
      _
    // Predicated region
    $region10: #{tpu_custom_call.1} parent=1 // pred_check
      _
    $region11: #{tpu_custom_call.1} parent=1 // pred_check_branch
      %51 = sbr.rel (0) target = $region13
    $region12: #{tpu_custom_call.1} parent=1 // pred_region
      %52 = dma.done [#allocation4], 128
    $region13: #{tpu_custom_call.1} parent=1 // pred_fallthru
      _
    %53 = vsyncpa [#allocation4], 1

</llo_original>
